<compile_context>
chip_gen: v5e
topology: v5e:2x2
jax: 0.10.0
libtpu: 0.0.40
codegen_flags: <defaults>
</compile_context>

<pallas_src>
import jax
import jax.numpy as jnp
from jax.experimental import pallas as pl
from jax.experimental.pallas import tpu as pltpu

HIDDEN = 128                       # fc1 width (fixed by the PyTorch module)
TB_MAX = 4096                      # max batch-tile rows (review: 4096-8192)
VMEM_BUDGET = 24 * 1024 * 1024     # per-call VMEM target, under 32 MiB scoped


def _cdiv(a, b):
    return -(-a // b)


def _round_up(x, m):
    return _cdiv(x, m) * m


def br_net_kernel(state_ref, mask_ref, w1_ref, b1_ref, w2_ref, b2_ref, out_ref):
    """relu(state @ W1 + b1) @ W2 + b2 + (mask - 1) * 1e9 for one batch tile."""
    # fc1 + ReLU: f32 operands, f32 accumulation on the MXU.
    h = jnp.dot(state_ref[...], w1_ref[...], preferred_element_type=jnp.float32)
    h = jnp.maximum(h + b1_ref[...], 0.0)                       # [TB, H] f32
    # head
    logits = jnp.dot(h, w2_ref[...], preferred_element_type=jnp.float32)
    logits = logits + b2_ref[...]                               # [TB, A] f32
    # Legal-action masking, exactly as the torch module: + (mask - 1) * 1e9.
    mask_bias = (mask_ref[...].astype(jnp.float32) - 1.0) * 1000000000.0
    out_ref[...] = (logits + mask_bias).astype(out_ref.dtype)


def _choose_tile(batch, state_dim, action_dim):
    """Batch tile: big enough to amortize per-step overhead, small enough to fit
    double-buffered in VMEM (with lane padding), >= 2 tiles for v7x megacore."""
    if batch <= 8:
        return batch                                   # single full-dim tile
    s_lanes = _round_up(state_dim, 128)                # VMEM lane padding of narrow dims
    a_lanes = _round_up(action_dim, 128)
    # Per batch row: double-buffered streamed blocks (state f32 + mask <=f32 +
    # out bf16) plus single-buffered f32 intermediates (h, logits).
    per_row = 2 * (4 * s_lanes + 4 * a_lanes + 2 * a_lanes) + 4 * (HIDDEN + a_lanes)
    tb = min(TB_MAX, max(8, (VMEM_BUDGET // per_row) // 8 * 8))
    # At least two tiles so both v7x TensorCores get work.
    tb = min(tb, _round_up(_cdiv(batch, 2), 8))
    # Prefer an even tile count when there are many tiles.
    n = _cdiv(batch, tb)
    if n > 2 and n % 2 == 1:
        tb = min(tb, _round_up(_cdiv(batch, n + 1), 8))
    return max(8, tb)


def br_net_forward(state, legal_actions_mask, w1_t, b1, w2_t, b2,
                   out_dtype=jnp.bfloat16):
    """state: [B, S], legal_actions_mask: [B, A] (0/1, any numeric dtype).

    w1_t: [S, H], b1: [H] or [1, H], w2_t: [H, A], b2: [A] or [1, A].
    Returns masked logits [B, A] in `out_dtype` (bf16 by default).
    """
    B, S = state.shape
    H = w1_t.shape[1]
    A = w2_t.shape[1]
    assert legal_actions_mask.shape == (B, A)
    assert w1_t.shape == (S, H) and w2_t.shape == (H, A)

    # Tiny, VMEM-resident params; no padding, no big wrapper-side copies.
    w1_f = jnp.asarray(w1_t, jnp.float32)
    w2_f = jnp.asarray(w2_t, jnp.float32)
    b1_f = jnp.asarray(b1, jnp.float32).reshape(1, H)
    b2_f = jnp.asarray(b2, jnp.float32).reshape(1, A)

    tb = _choose_tile(B, S, A)
    grid = (_cdiv(B, tb),)

    out_sds = jax.ShapeDtypeStruct((B, A), out_dtype)
    flops = 2 * B * (S * H + H * A)
    bytes_accessed = (
        state.size * state.dtype.itemsize
        + legal_actions_mask.size * legal_actions_mask.dtype.itemsize
        + B * A * out_sds.dtype.itemsize
        + w1_f.size * 4 + w2_f.size * 4 + (H + A) * 4)

    out = pl.pallas_call(
        br_net_kernel,
        out_shape=out_sds,
        grid_spec=pltpu.PrefetchScalarGridSpec(
            num_scalar_prefetch=0,
            grid=grid,
            in_specs=[
                pl.BlockSpec((tb, S), lambda i: (i, 0)),   # state (streamed)
                pl.BlockSpec((tb, A), lambda i: (i, 0)),   # mask  (streamed)
                pl.BlockSpec((S, H), lambda i: (0, 0)),    # W1    (VMEM-resident)
                pl.BlockSpec((1, H), lambda i: (0, 0)),    # b1    (VMEM-resident)
                pl.BlockSpec((H, A), lambda i: (0, 0)),    # W2    (VMEM-resident)
                pl.BlockSpec((1, A), lambda i: (0, 0)),    # b2    (VMEM-resident)
            ],
            out_specs=pl.BlockSpec((tb, A), lambda i: (i, 0)),
        ),
        compiler_params=pltpu.CompilerParams(
            dimension_semantics=("parallel",),             # 2-TC split on v7x
            vmem_limit_bytes=32 * 1024 * 1024,
        ),
        cost_estimate=pl.CostEstimate(
            flops=flops, transcendentals=0, bytes_accessed=bytes_accessed),
    )(state, legal_actions_mask, w1_f, b1_f, w2_f, b2_f)

    return out


def init_br_net_params(key, state_dim, action_dim, hidden=HIDDEN):
    """Deterministic synthetic parameters (PyTorch-Linear-style uniform init)."""
    k1, k2, k3, k4 = jax.random.split(key, 4)
    bound1 = 1.0 / jnp.sqrt(state_dim)
    bound2 = 1.0 / jnp.sqrt(hidden)
    # Stored already transposed: [in, out].
    w1_t = jax.random.uniform(k1, (state_dim, hidden), jnp.float32, -bound1, bound1)
    b1 = jax.random.uniform(k2, (1, hidden), jnp.float32, -bound1, bound1)
    w2_t = jax.random.uniform(k3, (hidden, action_dim), jnp.float32, -bound2, bound2)
    b2 = jax.random.uniform(k4, (1, action_dim), jnp.float32, -bound2, bound2)
    return w1_t, b1, w2_t, b2


if __name__ == "__main__":
    key = jax.random.PRNGKey(0)
    batch, state_dim, action_dim = 2, 16, 8

    k_params, k_state, k_mask = jax.random.split(key, 3)
    w1_t, b1, w2_t, b2 = init_br_net_params(k_params, state_dim, action_dim)

    state = jax.random.normal(k_state, (batch, state_dim), jnp.float32)
    legal_actions_mask = (
        jax.random.uniform(k_mask, (batch, action_dim)) > 0.5
    ).astype(jnp.float32)
    # Guarantee at least one legal action per row (column 0 always legal).
    legal_actions_mask = legal_actions_mask.at[:, 0].set(1.0)

    out = br_net_forward(state, legal_actions_mask, w1_t, b1, w2_t, b2)
    out = jax.block_until_ready(out)

    # Full-precision reference mirroring the torch module (fp32 end to end),
    # then rounded to the kernel's output dtype for comparison.
    h_ref = jnp.maximum(
        jnp.dot(state, w1_t, precision=jax.lax.Precision.HIGHEST) + b1, 0.0)
    ref = (jnp.dot(h_ref, w2_t, precision=jax.lax.Precision.HIGHEST) + b2
           + (legal_actions_mask - 1.0) * 1000000000.0)
    ref_q = ref.astype(out.dtype).astype(jnp.float32)
    out_f = out.astype(jnp.float32)

    assert out.shape == (batch, action_dim)
    max_err = float(jnp.max(jnp.abs(out_f - ref_q)))
    assert jnp.allclose(out_f, ref_q, rtol=2e-2, atol=2e-2), max_err

    print("KERNEL_OK")
</pallas_src>

<mosaic_0001>
module attributes {stable_mosaic.version = 11 : i64} {
  func.func @br_net_kernel(%arg0: i32, %arg1: memref<2x16xf32, #tpu.memory_space<vmem>>, %arg2: memref<2x8xf32, #tpu.memory_space<vmem>>, %arg3: memref<16x128xf32, #tpu.memory_space<vmem>>, %arg4: memref<1x128xf32, #tpu.memory_space<vmem>>, %arg5: memref<128x8xf32, #tpu.memory_space<vmem>>, %arg6: memref<1x8xf32, #tpu.memory_space<vmem>>, %arg7: memref<2x8xbf16, #tpu.memory_space<vmem>>) attributes {dimension_semantics = [#tpu.dimension_semantics<parallel>], iteration_bounds = array<i64: 1>, scalar_prefetch = 0 : i64, scratch_operands = 0 : i64, tpu.core_type = #tpu.core_type<tc>, window_params = [{transform_indices = @transform_0, window_bounds = array<i64: 2, 16>}, {transform_indices = @transform_1, window_bounds = array<i64: 2, 8>}, {pipeline_mode = #tpu.pipeline_mode<synchronous>, transform_indices = @transform_2, window_bounds = array<i64: 16, 128>}, {pipeline_mode = #tpu.pipeline_mode<synchronous>, transform_indices = @transform_3, window_bounds = array<i64: 1, 128>}, {pipeline_mode = #tpu.pipeline_mode<synchronous>, transform_indices = @transform_4, window_bounds = array<i64: 128, 8>}, {pipeline_mode = #tpu.pipeline_mode<synchronous>, transform_indices = @transform_5, window_bounds = array<i64: 1, 8>}, {transform_indices = @transform_6, window_bounds = array<i64: 2, 8>}]} {
    %c0 = arith.constant 0 : index
    %c0_0 = arith.constant 0 : index
    %0 = vector.load %arg1[%c0, %c0_0] : memref<2x16xf32, #tpu.memory_space<vmem>>, vector<2x16xf32>
    %c0_1 = arith.constant 0 : index
    %c0_2 = arith.constant 0 : index
    %1 = vector.load %arg3[%c0_1, %c0_2] : memref<16x128xf32, #tpu.memory_space<vmem>>, vector<16x128xf32>
    %cst = arith.constant dense<0.000000e+00> : vector<2x128xf32>
    %2 = tpu.matmul %0, %1, %cst {dimension_numbers = #tpu.dot_dimension_numbers<[1], [0], [0], [1], [0, 0, 1, 1], [], []>} : vector<2x16xf32>, vector<16x128xf32>, vector<2x128xf32> -> vector<2x128xf32>
    %c0_3 = arith.constant 0 : index
    %c0_4 = arith.constant 0 : index
    %3 = vector.load %arg4[%c0_3, %c0_4] : memref<1x128xf32, #tpu.memory_space<vmem>>, vector<1x128xf32>
    %4 = vector.broadcast %3 : vector<1x128xf32> to vector<2x128xf32>
    %5 = arith.addf %2, %4 : vector<2x128xf32>
    %cst_5 = arith.constant 0.000000e+00 : f32
    %6 = vector.broadcast %cst_5 : f32 to vector<2x128xf32>
    %7 = arith.maximumf %5, %6 : vector<2x128xf32>
    %c0_6 = arith.constant 0 : index
    %c0_7 = arith.constant 0 : index
    %8 = vector.load %arg5[%c0_6, %c0_7] : memref<128x8xf32, #tpu.memory_space<vmem>>, vector<128x8xf32>
    %cst_8 = arith.constant dense<0.000000e+00> : vector<2x8xf32>
    %9 = tpu.matmul %7, %8, %cst_8 {dimension_numbers = #tpu.dot_dimension_numbers<[1], [0], [0], [1], [0, 0, 1, 1], [], []>} : vector<2x128xf32>, vector<128x8xf32>, vector<2x8xf32> -> vector<2x8xf32>
    %c0_9 = arith.constant 0 : index
    %c0_10 = arith.constant 0 : index
    %10 = vector.load %arg6[%c0_9, %c0_10] : memref<1x8xf32, #tpu.memory_space<vmem>>, vector<1x8xf32>
    %11 = vector.broadcast %10 : vector<1x8xf32> to vector<2x8xf32>
    %12 = arith.addf %9, %11 : vector<2x8xf32>
    %c0_11 = arith.constant 0 : index
    %c0_12 = arith.constant 0 : index
    %13 = vector.load %arg2[%c0_11, %c0_12] : memref<2x8xf32, #tpu.memory_space<vmem>>, vector<2x8xf32>
    %cst_13 = arith.constant 1.000000e+00 : f32
    %14 = vector.broadcast %cst_13 : f32 to vector<2x8xf32>
    %15 = arith.subf %13, %14 : vector<2x8xf32>
    %cst_14 = arith.constant 1.000000e+09 : f32
    %16 = vector.broadcast %cst_14 : f32 to vector<2x8xf32>
    %17 = arith.mulf %15, %16 : vector<2x8xf32>
    %18 = arith.addf %12, %17 : vector<2x8xf32>
    %19 = arith.truncf %18 : vector<2x8xf32> to vector<2x8xbf16>
    %c0_15 = arith.constant 0 : index
    %c0_16 = arith.constant 0 : index
    %20 = vector.load %arg7[%c0_15, %c0_16] : memref<2x8xbf16, #tpu.memory_space<vmem>>, vector<2x8xbf16>
    tpu.vector_store %arg7[%c0_15, %c0_16], %19 {strides = array<i32>} : memref<2x8xbf16, #tpu.memory_space<vmem>>, vector<2x8xbf16>,
    return
  }
  func.func @transform_0(%arg0: i32) -> (i32, i32) {
    %c0_i32 = arith.constant 0 : i32
    %c0_i32_0 = arith.constant 0 : i32
    return %arg0, %c0_i32 : i32, i32
  }
  func.func @transform_1(%arg0: i32) -> (i32, i32) {
    %c0_i32 = arith.constant 0 : i32
    %c0_i32_0 = arith.constant 0 : i32
    return %arg0, %c0_i32 : i32, i32
  }
  func.func @transform_2(%arg0: i32) -> (i32, i32) {
    %c0_i32 = arith.constant 0 : i32
    %c0_i32_0 = arith.constant 0 : i32
    %c0_i32_1 = arith.constant 0 : i32
    return %c0_i32, %c0_i32_0 : i32, i32
  }
  func.func @transform_3(%arg0: i32) -> (i32, i32) {
    %c0_i32 = arith.constant 0 : i32
    %c0_i32_0 = arith.constant 0 : i32
    %c0_i32_1 = arith.constant 0 : i32
    return %c0_i32, %c0_i32_0 : i32, i32
  }
  func.func @transform_4(%arg0: i32) -> (i32, i32) {
    %c0_i32 = arith.constant 0 : i32
    %c0_i32_0 = arith.constant 0 : i32
    %c0_i32_1 = arith.constant 0 : i32
    return %c0_i32, %c0_i32_0 : i32, i32
  }
  func.func @transform_5(%arg0: i32) -> (i32, i32) {
    %c0_i32 = arith.constant 0 : i32
    %c0_i32_0 = arith.constant 0 : i32
    %c0_i32_1 = arith.constant 0 : i32
    return %c0_i32, %c0_i32_0 : i32, i32
  }
  func.func @transform_6(%arg0: i32) -> (i32, i32) {
    %c0_i32 = arith.constant 0 : i32
    %c0_i32_0 = arith.constant 0 : i32
    return %arg0, %c0_i32 : i32, i32
  }
}

</mosaic_0001>

<llo_original>
// kernel: tpu_custom_call.1
$region0: #{tpu_custom_call.1}
  #allocation0 [shape = 'u32[]', space=smem, size = 0x4, offset = 0x4, fixed_abs, tag = 'smem constant byte address 0x4 - core index']
  #allocation1 [shape = 'u32[72,128]{1,0:T(1,128)}', space=vmem, size = 0x9000, scoped, tag = 'internal scratch']
  %s0 = inlined_call_operand.vmem [shape: f32[2,16], index: 0, kind: input, shape index: {}]
  %s1 = inlined_call_operand.vmem [shape: f32[2,8], index: 1, kind: input, shape index: {}]
  %s2 = inlined_call_operand.vmem [shape: f32[16,128], index: 2, kind: input, shape index: {}]
  %s3 = inlined_call_operand.vmem [shape: f32[1,128], index: 3, kind: input, shape index: {}]
  %s4 = inlined_call_operand.vmem [shape: f32[128,8], index: 4, kind: input, shape index: {}]
  %s5 = inlined_call_operand.vmem [shape: f32[1,8], index: 5, kind: input, shape index: {}]
  %s6 = inlined_call_operand.hbm [shape: bf16[2,8], index: 6, kind: output, shape index: {}]
  %s7 = sld [smem:[#allocation0]]
  $region34: #{tpu_custom_call.1} parent=0
    _
  %s9 = ssub.s32 1, %s7
  %s10 = scalar_select 0, %s9, %s7
  $region1: #{tpu_custom_call.1} parent=0
    #allocation2 [shape = 'u8[512]{0}', space=vmem, size = 0x400, scoped, tag = 'output window, operand 0, single buffered']
    #allocation3 [shape = 's32[1]{0}', space=sflag, size = 0x4, scoped, tag = 'scoped memory for tpu_custom_call.1']
    %11 = vsyncpa [#allocation3], 0
    // Predicated region
    $region2: #{tpu_custom_call.1} parent=1 // pred_check
      _
    $region3: #{tpu_custom_call.1} parent=1 // pred_check_branch
      %13 = sbr.rel (0) target = $region5
    $region4: #{tpu_custom_call.1} parent=1 // pred_region
      _
    $region5: #{tpu_custom_call.1} parent=1 // pred_fallthru
      _
    // Predicated region
    $region6: #{tpu_custom_call.1} parent=1 // pred_check
      _
    $region7: #{tpu_custom_call.1} parent=1 // pred_check_branch
      %15 = sbr.rel (0) target = $region9
    $region8: #{tpu_custom_call.1} parent=1 // pred_region
      _
    $region9: #{tpu_custom_call.1} parent=1 // pred_fallthru
      _
    // Predicated region
    $region10: #{tpu_custom_call.1} parent=1 // pred_check
      _
    $region11: #{tpu_custom_call.1} parent=1 // pred_check_branch
      %17 = sbr.rel (0) target = $region13
    $region12: #{tpu_custom_call.1} parent=1 // pred_region
      _
    $region13: #{tpu_custom_call.1} parent=1 // pred_fallthru
      _
    // Predicated region
    $region14: #{tpu_custom_call.1} parent=1 // pred_check
      _
    $region15: #{tpu_custom_call.1} parent=1 // pred_check_branch
      %19 = sbr.rel (0) target = $region17
    $region16: #{tpu_custom_call.1} parent=1 // pred_region
      _
    $region17: #{tpu_custom_call.1} parent=1 // pred_fallthru
      _
    // Predicated region
    $region18: #{tpu_custom_call.1} parent=1 // pred_check
      _
    $region19: #{tpu_custom_call.1} parent=1 // pred_check_branch
      %21 = sbr.rel (0) target = $region21
    $region20: #{tpu_custom_call.1} parent=1 // pred_region
      _
    $region21: #{tpu_custom_call.1} parent=1 // pred_fallthru
      _
    // Predicated region
    $region22: #{tpu_custom_call.1} parent=1 // pred_check
      _
    $region23: #{tpu_custom_call.1} parent=1 // pred_check_branch
      %23 = sbr.rel (0) target = $region25
    $region24: #{tpu_custom_call.1} parent=1 // pred_region
      _
    $region25: #{tpu_custom_call.1} parent=1 // pred_fallthru
      _
    %v24 = vld [vmem:[%s0] sm:$0x3]
    %v25 = vld [vmem:[%s2] sm:$0xff]
    %v26 = vld [vmem:[%s2 + $0x8] sm:$0xff]
    %v27 = vld [vmem:[%s3] sm:$0x1]
    %v29 = vperm.slane %v27, 0
    %vm31 = vcmask 130048
    %v33 = vsel %vm31, %v24, 0
    %35 = vmatpush.msra.mxu0 0.0
    %36 = vmatpush.msra.mxu0 0.0
    %37 = vmatpush.msra.mxu0 0.0
    %38 = vmatpush.msra.mxu0 0.0
    %39 = vmatpush.msra.mxu0 0.0
    %40 = vmatpush.msra.mxu0 0.0
    %41 = vmatpush.msra.mxu0 0.0
    %42 = vmatpush.msra.mxu0 0.0
    %43 = vmatpush.msra.mxu0 0.0
    %44 = vmatpush.msra.mxu0 0.0
    %45 = vmatpush.msra.mxu0 0.0
    %46 = vmatpush.msra.mxu0 0.0
    %47 = vmatpush.msra.mxu0 0.0
    %48 = vmatpush.msra.mxu0 0.0
    %49 = vmatpush.msra.mxu0 %v26
    %50 = vmatpush.msra.mxu0 %v25
    %51 = vmatmul.f32.gmra.mxu0 %v33
    %v52 = vpop.f32.mrf.mxu0
    %v53 = vadd.f32 %v29, %v52
    %54 = vdwg.mxu0
    %v55 = vmax.f32 %v53, 0.0
    %v56 = vld [vmem:[%s4] sm:$0xff]
    %v57 = vld [vmem:[%s4 + $0x8] sm:$0xff]
    %v58 = vld [vmem:[%s4 + $0x10] sm:$0xff]
    %v59 = vld [vmem:[%s4 + $0x18] sm:$0xff]
    %v60 = vld [vmem:[%s4 + $0x20] sm:$0xff]
    %v61 = vld [vmem:[%s4 + $0x28] sm:$0xff]
    %v62 = vld [vmem:[%s4 + $0x30] sm:$0xff]
    %v63 = vld [vmem:[%s4 + $0x38] sm:$0xff]
    %v64 = vld [vmem:[%s4 + $0x40] sm:$0xff]
    %v65 = vld [vmem:[%s4 + $0x48] sm:$0xff]
    %v66 = vld [vmem:[%s4 + $0x50] sm:$0xff]
    %v67 = vld [vmem:[%s4 + $0x58] sm:$0xff]
    %v68 = vld [vmem:[%s4 + $0x60] sm:$0xff]
    %v69 = vld [vmem:[%s4 + $0x68] sm:$0xff]
    %v70 = vld [vmem:[%s4 + $0x70] sm:$0xff]
    %v71 = vld [vmem:[%s4 + $0x78] sm:$0xff]
    %v72 = vld [vmem:[%s5] sm:$0x1]
    %v74 = vperm.slane %v72, 0
    %76 = vmatpush.msra.mxu0 %v71
    %77 = vmatpush.msra.mxu0 %v70
    %78 = vmatpush.msra.mxu0 %v69
    %79 = vmatpush.msra.mxu0 %v68
    %80 = vmatpush.msra.mxu0 %v67
    %81 = vmatpush.msra.mxu0 %v66
    %82 = vmatpush.msra.mxu0 %v65
    %83 = vmatpush.msra.mxu0 %v64
    %84 = vmatpush.msra.mxu0 %v63
    %85 = vmatpush.msra.mxu0 %v62
    %86 = vmatpush.msra.mxu0 %v61
    %87 = vmatpush.msra.mxu0 %v60
    %88 = vmatpush.msra.mxu0 %v59
    %89 = vmatpush.msra.mxu0 %v58
    %90 = vmatpush.msra.mxu0 %v57
    %91 = vmatpush.msra.mxu0 %v56
    %92 = vmatmul.f32.gmra.mxu0 %v55
    %v93 = vpop.f32.mrf.mxu0
    %v94 = vadd.f32 %v74, %v93
    %95 = vdwg.mxu0
    %v96 = vld [vmem:[%s1] sm:$0x3]
    %v97 = vsub.f32 %v96, 1.0
    %v98 = vmul.f32 %v97, 1e+09
    %v99 = vadd.f32 %v94, %v98
    %v100 = vpack.c.bf16 %v99, %v99
    %vm101 = vcmask 57344
    %102 = vst.msk [vmem:[#allocation2] sm:$0x1] %vm101, %v100
    // Predicated region
    $region26: #{tpu_custom_call.1} parent=1 // pred_check
      _
    $region27: #{tpu_custom_call.1} parent=1 // pred_check_branch
      %104 = sbr.rel (0) target = $region29
    $region28: #{tpu_custom_call.1} parent=1 // pred_region
      %106 = vsyncadd [#allocation3], 0
      %s108 = sshll.u32 [#allocation2], 4
      %s109 = int_to_ptr.vmem [resolvable:$true] %s108
      %s110 = sshll.u32 %s6, 4
      %s111 = int_to_ptr.hbm [resolvable:$true] %s110
      %113 = dma.vmem_to_hbm [thread:$0]  %s109, 16, %s111, [#allocation3]
    $region29: #{tpu_custom_call.1} parent=1 // pred_fallthru
      _
    // Predicated region
    $region30: #{tpu_custom_call.1} parent=1 // pred_check
      _
    $region31: #{tpu_custom_call.1} parent=1 // pred_check_branch
      %115 = sbr.rel (0) target = $region33
    $region32: #{tpu_custom_call.1} parent=1 // pred_region
      %117 = dma.done [#allocation3], 16
    $region33: #{tpu_custom_call.1} parent=1 // pred_fallthru
      _
    %118 = vsyncpa [#allocation3], 1

</llo_original>
